<compile_context>
chip_gen: v7x
topology: tpu7x:2x2x1
jax: 0.10.0
libtpu: 0.0.40
codegen_flags: <defaults>
</compile_context>

<pallas_src>
import jax
import jax.numpy as jnp
from jax.experimental import pallas as pl
from jax.experimental.pallas import tpu as pltpu


def _round_up(v: int, m: int) -> int:
    return -(-v // m) * m


def _choose_block_planes(nc: int, cap: int, min_steps: int = 4) -> int:
    """Planes per grid step.

    Goals (in priority order): block as large as possible (amortize the
    ~0.35 us per-step overhead), at least `min_steps` grid steps (software
    pipelining), an even step count (v7x two-TensorCore split with >= 2 steps
    per core), and a block that divides `nc` exactly (no masked partial final
    block).
    """
    steps_floor = min(min_steps, nc)
    cap = max(1, min(cap, nc))
    # Largest block that still gives >= steps_floor grid steps.
    b_max = max(1, min(cap, nc // steps_floor))
    b_lo = max(1, b_max // 2)  # don't shrink below half of that for divisibility
    div_even = div_any = even_any = None
    for b in range(b_max, b_lo - 1, -1):
        steps = -(-nc // b)
        if nc % b == 0:
            if div_even is None and steps % 2 == 0:
                div_even = b
            if div_any is None:
                div_any = b
        elif even_any is None and steps % 2 == 0:
            even_any = b
    return div_even or div_any or even_any or b_max


def _make_crop_kernel(p: int, out_h: int, out_w: int):
    """Kernel copying the center (out_h x out_w) window of each plane."""

    def crop_kernel(x_ref, o_ref):
        # x_ref: (B, in_h_blk, W) leading rows of each plane (in_h_blk >= p+out_h)
        # o_ref: (B, out_h, out_w)
        # Static slice; the sublane/lane shift by `p` is handled by Mosaic with
        # rotates/selects and hides under the (much larger) per-step DMA.
        o_ref[...] = x_ref[:, p:p + out_h, p:p + out_w]

    return crop_kernel


def center_crop(x: jax.Array, size: int, *, block_planes: int = 128) -> jax.Array:
    """Pallas implementation of CenterCrop.forward (NCHW layout)."""
    assert size in {84, 96, 100, 112}, f"unexpected size: {size}"
    assert x.ndim == 4, "input must be a 4D tensor"

    N, C, H, W = x.shape
    if H == size and W == size:
        return x
    assert W == 100, f"unexpected size: {W}"

    if size == 96:
        p = 2
    elif size == 84:
        p = 8
    else:
        # The PyTorch module would hit an undefined `p` here (e.g. size=100/112
        # with a 100-wide, non-passthrough input); fail loudly instead.
        raise AssertionError(f"cannot crop from {W} to {size}")
    assert H > 2 * p, f"input height {H} too small to crop by {p} on each side"

    out_h, out_w = H - 2 * p, W - 2 * p  # matches x[:, :, p:-p, p:-p]

    # Flatten leading dims so one grid step processes many planes.
    NC = N * C
    xf = x.reshape(NC, H, W)

    # Only rows p .. p+out_h of each plane are needed.  DMA just the leading
    # round_up(p + out_h, 8) rows when that is < H (legal: sublane block dim is
    # a multiple of 8, lane dim is kept at the full W).  For p=2 this rounds
    # past H so the full plane is read.
    in_h_blk = _round_up(p + out_h, 8)
    if in_h_blk >= H:
        in_h_blk = H

    B = _choose_block_planes(NC, block_planes)
    grid = (pl.cdiv(NC, B),)

    # Double-buffered VMEM footprint of the padded in/out tiles.
    isz = x.dtype.itemsize
    in_plane = _round_up(in_h_blk, 8) * _round_up(W, 128) * isz
    out_plane = _round_up(out_h, 8) * _round_up(out_w, 128) * isz
    vmem_need = 2 * B * (in_plane + out_plane)
    vmem_limit = max(32 * 1024 * 1024, vmem_need + (4 << 20))

    bytes_accessed = NC * (in_h_blk * W + out_h * out_w) * isz

    out = pl.pallas_call(
        _make_crop_kernel(p, out_h, out_w),
        out_shape=jax.ShapeDtypeStruct((NC, out_h, out_w), x.dtype),
        grid_spec=pltpu.PrefetchScalarGridSpec(
            num_scalar_prefetch=0,
            grid=grid,
            in_specs=[
                # Lane dim equals the full array dim (exempt from the 128
                # rule); sublane dim is a multiple of 8 (or the full H).
                pl.BlockSpec((B, in_h_blk, W), lambda i: (i, 0, 0)),
            ],
            out_specs=pl.BlockSpec((B, out_h, out_w), lambda i: (i, 0, 0)),
        ),
        compiler_params=pltpu.CompilerParams(
            dimension_semantics=("parallel",),
            vmem_limit_bytes=int(vmem_limit),
        ),
        cost_estimate=pl.CostEstimate(
            flops=0, transcendentals=0, bytes_accessed=int(bytes_accessed)),
    )(xf)

    return out.reshape(N, C, out_h, out_w)


if __name__ == "__main__":
    key = jax.random.PRNGKey(0)
    # Module's assert requires spatial width == 100 when cropping.
    N, C, H, W = 2, 4, 100, 100
    x = jax.random.normal(key, (N, C, H, W), dtype=jnp.float32)

    # size = 84  ->  p = 8  (NC=8 -> B=2, 4-step even grid)
    y84 = jax.block_until_ready(center_crop(x, 84))
    ref84 = x[:, :, 8:-8, 8:-8]
    assert y84.shape == (N, C, 84, 84), y84.shape
    assert jnp.array_equal(y84, ref84), "mismatch vs reference crop (84)"

    # size = 96  ->  p = 2
    y96 = jax.block_until_ready(center_crop(x, 96))
    ref96 = x[:, :, 2:-2, 2:-2]
    assert y96.shape == (N, C, 96, 96), y96.shape
    assert jnp.array_equal(y96, ref96), "mismatch vs reference crop (96)"

    # Pass-through branch (H == W == size).
    x_same = jax.random.normal(jax.random.PRNGKey(1), (N, C, 96, 96), jnp.float32)
    y_same = jax.block_until_ready(center_crop(x_same, 96))
    assert jnp.array_equal(y_same, x_same)

    print("KERNEL_OK")
</pallas_src>

<mosaic_0001>
module attributes {stable_mosaic.version = 11 : i64} {
  func.func @crop_kernel(%arg0: i32, %arg1: memref<2x96x100xf32, #tpu.memory_space<vmem>>, %arg2: memref<2x84x84xf32, #tpu.memory_space<vmem>>) attributes {dimension_semantics = [#tpu.dimension_semantics<parallel>], iteration_bounds = array<i64: 4>, scalar_prefetch = 0 : i64, scratch_operands = 0 : i64, tpu.core_type = #tpu.core_type<tc>, window_params = [{transform_indices = @transform_0, window_bounds = array<i64: 2, 96, 100>}, {transform_indices = @transform_1, window_bounds = array<i64: 2, 84, 84>}]} {
    %c0 = arith.constant 0 : index
    %c8 = arith.constant 8 : index
    %c8_0 = arith.constant 8 : index
    %0 = vector.load %arg1[%c0, %c8, %c8_0] : memref<2x96x100xf32, #tpu.memory_space<vmem>>, vector<2x84x84xf32>
    %c0_1 = arith.constant 0 : index
    %c0_2 = arith.constant 0 : index
    %c0_3 = arith.constant 0 : index
    %1 = vector.load %arg2[%c0_1, %c0_2, %c0_3] : memref<2x84x84xf32, #tpu.memory_space<vmem>>, vector<2x84x84xf32>
    tpu.vector_store %arg2[%c0_1, %c0_2, %c0_3], %0 {strides = array<i32>} : memref<2x84x84xf32, #tpu.memory_space<vmem>>, vector<2x84x84xf32>,
    return
  }
  func.func @transform_0(%arg0: i32) -> (i32, i32, i32) {
    %c0_i32 = arith.constant 0 : i32
    %c0_i32_0 = arith.constant 0 : i32
    %c0_i32_1 = arith.constant 0 : i32
    return %arg0, %c0_i32, %c0_i32_0 : i32, i32, i32
  }
  func.func @transform_1(%arg0: i32) -> (i32, i32, i32) {
    %c0_i32 = arith.constant 0 : i32
    %c0_i32_0 = arith.constant 0 : i32
    %c0_i32_1 = arith.constant 0 : i32
    return %arg0, %c0_i32, %c0_i32_0 : i32, i32, i32
  }
}

</mosaic_0001>

<llo_original>
// kernel: tpu_custom_call.1
$region0: #{tpu_custom_call.1}
  #allocation0 [shape = 'u32[]', space=smem, size = 0x4, offset = 0x4, fixed_abs, tag = 'smem constant byte address 0x4 - core index']
  #allocation1 [shape = 'u32[144,128]{1,0:T(1,128)}', space=vmem, size = 0x12000, scoped, tag = 'internal scratch']
  %s0 = inlined_call_operand.vmem [shape: f32[8,100,100], index: 0, kind: input, shape index: {}]
  %s1 = inlined_call_operand.vmem [shape: f32[8,84,84], index: 1, kind: output, shape index: {}]
  %s2 = sld [smem:[#allocation0]]
  $region75: #{tpu_custom_call.1} parent=0
    _
  %s4 = ssub.s32 1, %s2
  %s5 = scalar_select 0, %s4, %s2
  $region1: #{tpu_custom_call.1} parent=0
    #allocation2 [shape = 'u8[196608]{0}', space=vmem, size = 0x30000, scoped, tag = 'input window, operand 0']
    loop: start=0, step=1, limit=6
    $region2: #{tpu_custom_call.1} parent=1 // loop_pre_header
      _
    $region3: #{tpu_custom_call.1} parent=1 // loop_header
      %s7 = sphi 0, %s11
      %p8 = scmp.ge.s32.totalorder %s7, 6
      %s17 = sphi 0, %s19
      %s20 = sphi 0, %s17
      %s21 = sphi 0, %s20
      %s37 = sphi 0, %s21
      %s43 = sphi 0, %s45
      %s46 = sphi 0, %s43
      %s47 = sphi 0, %s46
      %s63 = sphi 0, %s47
    $region4: #{tpu_custom_call.1} parent=1 // loop_header_branch
      %10 = sbr.rel (%p8) target = $region8
    $region5: #{tpu_custom_call.1} parent=1 // loop_body
      %s12 = ssub.s32 %s7, 1
      %s13 = ssub.s32 %s7, 2
      %s14 = sadd.s32 %s7, 1
      %s15 = ssub.s32 %s7, %s14
      %p16 = scmp.eq.s32.totalorder %s15, 0
      %s18 = sadd.s32 %s17, 1
      %s19 = scalar_select %p16, %s17, %s18
      %p22 = pneg %p16
      %p23 = scmp.eq.s32.totalorder %s7, 3
      %p24 = por %p22, %p23
      %p25 = scmp.ne.s32.totalorder %s17, %s20
      %p26 = scmp.eq.s32.totalorder %s7, 0
      %p27 = por %p25, %p26
      %p28 = scmp.ne.s32.totalorder %s17, %s20
      %p29 = scmp.eq.s32.totalorder %s12, 3
      %p30 = por %p28, %p29
      %p31 = scmp.ne.s32.totalorder %s20, %s21
      %p32 = scmp.eq.s32.totalorder %s12, 0
      %p33 = por %p31, %p32
      %p34 = scmp.ne.s32.totalorder %s20, %s21
      %p35 = scmp.eq.s32.totalorder %s13, 3
      %p36 = por %p34, %p35
      %p38 = scmp.ne.s32.totalorder %s21, %s37
      %p39 = scmp.eq.s32.totalorder %s13, 0
      %p40 = por %p38, %p39
      %s41 = ssub.s32 %s7, %s14
      %p42 = scmp.eq.s32.totalorder %s41, 0
      %s44 = sadd.s32 %s43, 1
      %s45 = scalar_select %p42, %s43, %s44
      %p48 = pneg %p42
      %p49 = scmp.eq.s32.totalorder %s7, 3
      %p50 = por %p48, %p49
      %p51 = scmp.ne.s32.totalorder %s43, %s46
      %p52 = scmp.eq.s32.totalorder %s7, 0
      %p53 = por %p51, %p52
      %p54 = scmp.ne.s32.totalorder %s43, %s46
      %p55 = scmp.eq.s32.totalorder %s12, 3
      %p56 = por %p54, %p55
      %p57 = scmp.ne.s32.totalorder %s46, %s47
      %p58 = scmp.eq.s32.totalorder %s12, 0
      %p59 = por %p57, %p58
      %p60 = scmp.ne.s32.totalorder %s46, %s47
      %p61 = scmp.eq.s32.totalorder %s13, 3
      %p62 = por %p60, %p61
      %p64 = scmp.ne.s32.totalorder %s47, %s63
      %p65 = scmp.eq.s32.totalorder %s13, 0
      %p66 = por %p64, %p65
      %p67 = scmp.le.s32.totalorder 1, %s7
      %p68 = scmp.lt.s32.totalorder %s7, 5
      %p69 = pnand %p67, %p68
      %p70 = pneg %p69
      // Predicated region
      $region9: #{tpu_custom_call.1} parent=5 // pred_check
        _
      $region10: #{tpu_custom_call.1} parent=5 // pred_check_branch
        %72 = sbr.rel (%p69) target = $region12
      $region11: #{tpu_custom_call.1} parent=5 // pred_region
        %s73 = ssub.s32 %s7, 1
      $region12: #{tpu_custom_call.1} parent=5 // pred_fallthru
        _
      %p74 = scmp.lt.s32.totalorder %s7, 4
      // Predicated region
      $region13: #{tpu_custom_call.1} parent=5 // pred_check
        %p75 = pneg %p74
      $region14: #{tpu_custom_call.1} parent=5 // pred_check_branch
        %77 = sbr.rel (%p75) target = $region16
      $region15: #{tpu_custom_call.1} parent=5 // pred_region
        // Predicated region
        $region17: #{tpu_custom_call.1} parent=15 // pred_check
          %p78 = pneg %p27
        $region18: #{tpu_custom_call.1} parent=15 // pred_check_branch
          %80 = sbr.rel (%p78) target = $region20
        $region19: #{tpu_custom_call.1} parent=15 // pred_region
          %s81 = sand.u32 %s17, 1
          %s82 = sand.u32 %s17, 1
          %s83 = smul.addr %s82, 192
          %s84 = scalar_lea.vmem [#allocation2], %s83
          %s85 = smul.u32 2, %s7
          %s86 = smul.addr %s85, 13
          %s87 = smul.addr %s86, 8
          %s88 = scalar_lea.vmem %s0, %s87
          // Predicated region
          $region21: #{tpu_custom_call.1} parent=19 // pred_check
            _
          $region22: #{tpu_custom_call.1} parent=19 // pred_check_branch
            %90 = sbr.rel (0) target = $region24
          $region23: #{tpu_custom_call.1} parent=19 // pred_region
            // Predicated region
            $region25: #{tpu_custom_call.1} parent=23 // pred_check
              _
            $region26: #{tpu_custom_call.1} parent=23 // pred_check_branch
              %92 = sbr.rel (0) target = $region28
            $region27: #{tpu_custom_call.1} parent=23 // pred_region
              // Predicated region
              $region40: #{tpu_custom_call.1} parent=27 // pred_check
                _
              $region41: #{tpu_custom_call.1} parent=27 // pred_check_branch
                %153 = sbr.rel (0) target = $region43
              $region42: #{tpu_custom_call.1} parent=27 // pred_region
                loop: start=0, step=1, limit=1
                $region44: #{tpu_custom_call.1} parent=42 // loop_pre_header
                  _
                $region45: #{tpu_custom_call.1} parent=42 // loop_header
                  %s155 = sphi 0, %s159
                  %p156 = scmp.ge.s32.totalorder %s155, 1
                  %s160 = sphi %s88, %s88
                  %s161 = sphi %s84, %s84
                $region46: #{tpu_custom_call.1} parent=42 // loop_header_branch
                  %158 = sbr.rel (%p156) target = $region50
                $region47: #{tpu_custom_call.1} parent=42 // loop_body
                  %v162 = vld [vmem:[%s160] sm:$0xff]
                  %163 = vst [vmem:[%s161] sm:$0xff] %v162
                  %v164 = vld [vmem:[%s160 + $0x8] sm:$0xff]
                  %165 = vst [vmem:[%s161 + $0x8] sm:$0xff] %v164
                  %v166 = vld [vmem:[%s160 + $0x10] sm:$0xff]
                  %167 = vst [vmem:[%s161 + $0x10] sm:$0xff] %v166
                  %v168 = vld [vmem:[%s160 + $0x18] sm:$0xff]
                  %169 = vst [vmem:[%s161 + $0x18] sm:$0xff] %v168
                  %v170 = vld [vmem:[%s160 + $0x20] sm:$0xff]
                  %171 = vst [vmem:[%s161 + $0x20] sm:$0xff] %v170
                  %v172 = vld [vmem:[%s160 + $0x28] sm:$0xff]
                  %173 = vst [vmem:[%s161 + $0x28] sm:$0xff] %v172
                  %v174 = vld [vmem:[%s160 + $0x30] sm:$0xff]
                  %175 = vst [vmem:[%s161 + $0x30] sm:$0xff] %v174
                  %v176 = vld [vmem:[%s160 + $0x38] sm:$0xff]
                  %177 = vst [vmem:[%s161 + $0x38] sm:$0xff] %v176
                  %v178 = vld [vmem:[%s160 + $0x40] sm:$0xff]
                  %179 = vst [vmem:[%s161 + $0x40] sm:$0xff] %v178
                  %v180 = vld [vmem:[%s160 + $0x48] sm:$0xff]
                  %181 = vst [vmem:[%s161 + $0x48] sm:$0xff] %v180
                  %v182 = vld [vmem:[%s160 + $0x50] sm:$0xff]
                  %183 = vst [vmem:[%s161 + $0x50] sm:$0xff] %v182
                  %v184 = vld [vmem:[%s160 + $0x58] sm:$0xff]
                  %185 = vst [vmem:[%s161 + $0x58] sm:$0xff] %v184
                  %v186 = vld [vmem:[%s160 + $0x68] sm:$0xff]
                  %187 = vst [vmem:[%s161 + $0x60] sm:$0xff] %v186
                  %v188 = vld [vmem:[%s160 + $0x70] sm:$0xff]
                  %189 = vst [vmem:[%s161 + $0x68] sm:$0xff] %v188
                  %v190 = vld [vmem:[%s160 + $0x78] sm:$0xff]
                  %191 = vst [vmem:[%s161 + $0x70] sm:$0xff] %v190
                  %v192 = vld [vmem:[%s160 + $0x80] sm:$0xff]
                  %193 = vst [vmem:[%s161 + $0x78] sm:$0xff] %v192
                  %v194 = vld [vmem:[%s160 + $0x88] sm:$0xff]
                  %195 = vst [vmem:[%s161 + $0x80] sm:$0xff] %v194
                  %v196 = vld [vmem:[%s160 + $0x90] sm:$0xff]
                  %197 = vst [vmem:[%s161 + $0x88] sm:$0xff] %v196
                  %v198 = vld [vmem:[%s160 + $0x98] sm:$0xff]
                  %199 = vst [vmem:[%s161 + $0x90] sm:$0xff] %v198
                  %v200 = vld [vmem:[%s160 + $0xa0] sm:$0xff]
                  %201 = vst [vmem:[%s161 + $0x98] sm:$0xff] %v200
                  %v202 = vld [vmem:[%s160 + $0xa8] sm:$0xff]
                  %203 = vst [vmem:[%s161 + $0xa0] sm:$0xff] %v202
                  %v204 = vld [vmem:[%s160 + $0xb0] sm:$0xff]
                  %205 = vst [vmem:[%s161 + $0xa8] sm:$0xff] %v204
                  %v206 = vld [vmem:[%s160 + $0xb8] sm:$0xff]
                  %207 = vst [vmem:[%s161 + $0xb0] sm:$0xff] %v206
                  %v208 = vld [vmem:[%s160 + $0xc0] sm:$0xff]
                  %209 = vst [vmem:[%s161 + $0xb8] sm:$0xff] %v208
                $region48: #{tpu_custom_call.1} parent=42 // loop_footer
                  %s159 = sadd.s32 1, %s155
                $region49: #{tpu_custom_call.1} parent=42 // loop_footer_branch
                  %154 = sbr.rel target = $region45
                $region50: #{tpu_custom_call.1} parent=42 // loop_exit
                  _
              $region43: #{tpu_custom_call.1} parent=27 // pred_fallthru
                _
              // Predicated region
              $region51: #{tpu_custom_call.1} parent=27 // pred_check
                _
              $region52: #{tpu_custom_call.1} parent=27 // pred_check_branch
                %211 = sbr.rel target = $region54
              $region53: #{tpu_custom_call.1} parent=27 // pred_region
                _
              $region54: #{tpu_custom_call.1} parent=27 // pred_fallthru
                _
            $region28: #{tpu_custom_call.1} parent=23 // pred_fallthru
              _
            // Predicated region
            $region29: #{tpu_custom_call.1} parent=23 // pred_check
              _
            $region30: #{tpu_custom_call.1} parent=23 // pred_check_branch
              %94 = sbr.rel target = $region32
            $region31: #{tpu_custom_call.1} parent=23 // pred_region
              loop: start=0, step=1, limit=1
              $region33: #{tpu_custom_call.1} parent=31 // loop_pre_header
                _
              $region34: #{tpu_custom_call.1} parent=31 // loop_header
                %s97 = sphi 0, %s101
                %p98 = scmp.ge.s32.totalorder %s97, 1
                %s102 = sphi %s88, %s88
                %s103 = sphi %s84, %s84
              $region35: #{tpu_custom_call.1} parent=31 // loop_header_branch
                %100 = sbr.rel (%p98) target = $region39
              $region36: #{tpu_custom_call.1} parent=31 // loop_body
                %v104 = vld [vmem:[%s102] sm:$0xff]
                %105 = vst [vmem:[%s103] sm:$0xff] %v104
                %v106 = vld [vmem:[%s102 + $0x8] sm:$0xff]
                %107 = vst [vmem:[%s103 + $0x8] sm:$0xff] %v106
                %v108 = vld [vmem:[%s102 + $0x10] sm:$0xff]
                %109 = vst [vmem:[%s103 + $0x10] sm:$0xff] %v108
                %v110 = vld [vmem:[%s102 + $0x18] sm:$0xff]
                %111 = vst [vmem:[%s103 + $0x18] sm:$0xff] %v110
                %v112 = vld [vmem:[%s102 + $0x20] sm:$0xff]
                %113 = vst [vmem:[%s103 + $0x20] sm:$0xff] %v112
                %v114 = vld [vmem:[%s102 + $0x28] sm:$0xff]
                %115 = vst [vmem:[%s103 + $0x28] sm:$0xff] %v114
                %v116 = vld [vmem:[%s102 + $0x30] sm:$0xff]
                %117 = vst [vmem:[%s103 + $0x30] sm:$0xff] %v116
                %v118 = vld [vmem:[%s102 + $0x38] sm:$0xff]
                %119 = vst [vmem:[%s103 + $0x38] sm:$0xff] %v118
                %v120 = vld [vmem:[%s102 + $0x40] sm:$0xff]
                %121 = vst [vmem:[%s103 + $0x40] sm:$0xff] %v120
                %v122 = vld [vmem:[%s102 + $0x48] sm:$0xff]
                %123 = vst [vmem:[%s103 + $0x48] sm:$0xff] %v122
                %v124 = vld [vmem:[%s102 + $0x50] sm:$0xff]
                %125 = vst [vmem:[%s103 + $0x50] sm:$0xff] %v124
                %v126 = vld [vmem:[%s102 + $0x58] sm:$0xff]
                %127 = vst [vmem:[%s103 + $0x58] sm:$0xff] %v126
                %v128 = vld [vmem:[%s102 + $0x68] sm:$0xff]
                %129 = vst [vmem:[%s103 + $0x60] sm:$0xff] %v128
                %v130 = vld [vmem:[%s102 + $0x70] sm:$0xff]
                %131 = vst [vmem:[%s103 + $0x68] sm:$0xff] %v130
                %v132 = vld [vmem:[%s102 + $0x78] sm:$0xff]
                %133 = vst [vmem:[%s103 + $0x70] sm:$0xff] %v132
                %v134 = vld [vmem:[%s102 + $0x80] sm:$0xff]
                %135 = vst [vmem:[%s103 + $0x78] sm:$0xff] %v134
                %v136 = vld [vmem:[%s102 + $0x88] sm:$0xff]
                %137 = vst [vmem:[%s103 + $0x80] sm:$0xff] %v136
                %v138 = vld [vmem:[%s102 + $0x90] sm:$0xff]
                %139 = vst [vmem:[%s103 + $0x88] sm:$0xff] %v138
                %v140 = vld [vmem:[%s102 + $0x98] sm:$0xff]
                %141 = vst [vmem:[%s103 + $0x90] sm:$0xff] %v140
                %v142 = vld [vmem:[%s102 + $0xa0] sm:$0xff]
                %143 = vst [vmem:[%s103 + $0x98] sm:$0xff] %v142
                %v144 = vld [vmem:[%s102 + $0xa8] sm:$0xff]
                %145 = vst [vmem:[%s103 + $0xa0] sm:$0xff] %v144
                %v146 = vld [vmem:[%s102 + $0xb0] sm:$0xff]
                %147 = vst [vmem:[%s103 + $0xa8] sm:$0xff] %v146
                %v148 = vld [vmem:[%s102 + $0xb8] sm:$0xff]
                %149 = vst [vmem:[%s103 + $0xb0] sm:$0xff] %v148
                %v150 = vld [vmem:[%s102 + $0xc0] sm:$0xff]
                %151 = vst [vmem:[%s103 + $0xb8] sm:$0xff] %v150
              $region37: #{tpu_custom_call.1} parent=31 // loop_footer
                %s101 = sadd.s32 1, %s97
              $region38: #{tpu_custom_call.1} parent=31 // loop_footer_branch
                %96 = sbr.rel target = $region34
              $region39: #{tpu_custom_call.1} parent=31 // loop_exit
                _
            $region32: #{tpu_custom_call.1} parent=23 // pred_fallthru
              _
          $region24: #{tpu_custom_call.1} parent=19 // pred_fallthru
            _
          %212 = vnop
        $region20: #{tpu_custom_call.1} parent=15 // pred_fallthru
          _
      $region16: #{tpu_custom_call.1} parent=5 // pred_fallthru
        _
      %p213 = scmp.le.s32.totalorder 1, %s7
      %p214 = scmp.lt.s32.totalorder %s7, 5
      %p215 = pnand %p213, %p214
      %p216 = pneg %p215
      // Predicated region
      $region55: #{tpu_custom_call.1} parent=5 // pred_check
        _
      $region56: #{tpu_custom_call.1} parent=5 // pred_check_branch
        %218 = sbr.rel (%p215) target = $region58
      $region57: #{tpu_custom_call.1} parent=5 // pred_region
        %s219 = ssub.s32 %s7, 1
        %s220 = sand.u32 %s20, 1
        %s221 = sand.u32 %s20, 1
        %s222 = smul.addr %s221, 192
        %s223 = scalar_lea.vmem [#allocation2], %s222
        // Predicated region
        $region59: #{tpu_custom_call.1} parent=57 // pred_check
          %p224 = pneg %p33
        $region60: #{tpu_custom_call.1} parent=57 // pred_check_branch
          %226 = sbr.rel (%p224) target = $region62
        $region61: #{tpu_custom_call.1} parent=57 // pred_region
          _
        $region62: #{tpu_custom_call.1} parent=57 // pred_fallthru
          _
        %s227 = sand.u32 %s20, 1
        %s228 = sand.u32 %s20, 1
        %s229 = smul.addr %s228, 192
        %s230 = scalar_lea.vmem [#allocation2], %s229
        %p231 = pneg %p33
        %p232 = pneg %p30
        %p233 = pneg %p59
        %p234 = pneg %p56
        %s235 = smul.u32 2, %s12
        %p236 = scmp.lt.s32.totalorder %s235, 7
        %s237 = scalar_select %p236, %s235, 7
        %s238 = smul.addr %s237, 11
        %s239 = smul.addr %s238, 8
        %s240 = scalar_lea.vmem %s1, %s239
        %s241 = smul.u32 2, %s12
        %s242 = smul.u32 2, %s12
        %p243 = scmp.lt.s32.totalorder %s242, 7
        %s244 = scalar_select %p243, %s242, 7
        %s245 = smul.addr %s244, 11
        %s246 = smul.addr %s245, 8
        %s247 = scalar_lea.vmem %s1, %s246
        %s248 = smul.u32 2, %s12
        %v249 = vld [vmem:[%s223 + $0x8] sm:$0xff]
        %v250 = vld [vmem:[%s223 + $0x10] sm:$0xff]
        %v251 = vld [vmem:[%s223 + $0x18] sm:$0xff]
        %v252 = vld [vmem:[%s223 + $0x20] sm:$0xff]
        %v253 = vld [vmem:[%s223 + $0x28] sm:$0xff]
        %v254 = vld [vmem:[%s223 + $0x30] sm:$0xff]
        %v255 = vld [vmem:[%s223 + $0x38] sm:$0xff]
        %v256 = vld [vmem:[%s223 + $0x40] sm:$0xff]
        %v257 = vld [vmem:[%s223 + $0x48] sm:$0xff]
        %v258 = vld [vmem:[%s223 + $0x50] sm:$0xff]
        %v259 = vld [vmem:[%s223 + $0x58] sm:$0xf]
        %v260 = vld [vmem:[%s223 + $0x68] sm:$0xff]
        %v261 = vld [vmem:[%s223 + $0x70] sm:$0xff]
        %v262 = vld [vmem:[%s223 + $0x78] sm:$0xff]
        %v263 = vld [vmem:[%s223 + $0x80] sm:$0xff]
        %v264 = vld [vmem:[%s223 + $0x88] sm:$0xff]
        %v265 = vld [vmem:[%s223 + $0x90] sm:$0xff]
        %v266 = vld [vmem:[%s223 + $0x98] sm:$0xff]
        %v267 = vld [vmem:[%s223 + $0xa0] sm:$0xff]
        %v268 = vld [vmem:[%s223 + $0xa8] sm:$0xff]
        %v269 = vld [vmem:[%s223 + $0xb0] sm:$0xff]
        %v270 = vld [vmem:[%s223 + $0xb8] sm:$0xf]
        %293 = vrot.lane.b32.xlu0 %v249, 120
        %v294 = vpop.permute.xlu0 %293
        %295 = vrot.lane.b32.xlu0 %v250, 120
        %v296 = vpop.permute.xlu0 %295
        %297 = vrot.lane.b32.xlu0 %v251, 120
        %v298 = vpop.permute.xlu0 %297
        %299 = vrot.lane.b32.xlu0 %v252, 120
        %v300 = vpop.permute.xlu0 %299
        %301 = vrot.lane.b32.xlu0 %v253, 120
        %v302 = vpop.permute.xlu0 %301
        %303 = vrot.lane.b32.xlu0 %v254, 120
        %v304 = vpop.permute.xlu0 %303
        %305 = vrot.lane.b32.xlu0 %v255, 120
        %v306 = vpop.permute.xlu0 %305
        %307 = vrot.lane.b32.xlu0 %v256, 120
        %v308 = vpop.permute.xlu0 %307
        %309 = vrot.lane.b32.xlu0 %v257, 120
        %v310 = vpop.permute.xlu0 %309
        %311 = vrot.lane.b32.xlu0 %v258, 120
        %v312 = vpop.permute.xlu0 %311
        %313 = vrot.lane.b32.xlu0 %v259, 120
        %v314 = vpop.permute.xlu0 %313
        %315 = vrot.lane.b32.xlu0 %v260, 120
        %v316 = vpop.permute.xlu0 %315
        %317 = vrot.lane.b32.xlu0 %v261, 120
        %v318 = vpop.permute.xlu0 %317
        %319 = vrot.lane.b32.xlu0 %v262, 120
        %v320 = vpop.permute.xlu0 %319
        %321 = vrot.lane.b32.xlu0 %v263, 120
        %v322 = vpop.permute.xlu0 %321
        %323 = vrot.lane.b32.xlu0 %v264, 120
        %v324 = vpop.permute.xlu0 %323
        %325 = vrot.lane.b32.xlu0 %v265, 120
        %v326 = vpop.permute.xlu0 %325
        %327 = vrot.lane.b32.xlu0 %v266, 120
        %v328 = vpop.permute.xlu0 %327
        %329 = vrot.lane.b32.xlu0 %v267, 120
        %v330 = vpop.permute.xlu0 %329
        %331 = vrot.lane.b32.xlu0 %v268, 120
        %v332 = vpop.permute.xlu0 %331
        %333 = vrot.lane.b32.xlu0 %v269, 120
        %v334 = vpop.permute.xlu0 %333
        %335 = vrot.lane.b32.xlu0 %v270, 120
        %v336 = vpop.permute.xlu0 %335
        %vm359 = vcmask 687104
        %360 = vst.msk [vmem:[%s247] sm:$0xff] %vm359, %v294
        %361 = vst.msk [vmem:[%s247 + $0x8] sm:$0xff] %vm359, %v296
        %362 = vst.msk [vmem:[%s247 + $0x10] sm:$0xff] %vm359, %v298
        %363 = vst.msk [vmem:[%s247 + $0x18] sm:$0xff] %vm359, %v300
        %364 = vst.msk [vmem:[%s247 + $0x20] sm:$0xff] %vm359, %v302
        %365 = vst.msk [vmem:[%s247 + $0x28] sm:$0xff] %vm359, %v304
        %366 = vst.msk [vmem:[%s247 + $0x30] sm:$0xff] %vm359, %v306
        %367 = vst.msk [vmem:[%s247 + $0x38] sm:$0xff] %vm359, %v308
        %368 = vst.msk [vmem:[%s247 + $0x40] sm:$0xff] %vm359, %v310
        %369 = vst.msk [vmem:[%s247 + $0x48] sm:$0xff] %vm359, %v312
        %vm370 = vcmask 683008
        %371 = vst.msk [vmem:[%s247 + $0x50] sm:$0xf] %vm370, %v314
        %372 = vst.msk [vmem:[%s247 + $0x58] sm:$0xff] %vm359, %v316
        %373 = vst.msk [vmem:[%s247 + $0x60] sm:$0xff] %vm359, %v318
        %374 = vst.msk [vmem:[%s247 + $0x68] sm:$0xff] %vm359, %v320
        %375 = vst.msk [vmem:[%s247 + $0x70] sm:$0xff] %vm359, %v322
        %376 = vst.msk [vmem:[%s247 + $0x78] sm:$0xff] %vm359, %v324
        %377 = vst.msk [vmem:[%s247 + $0x80] sm:$0xff] %vm359, %v326
        %378 = vst.msk [vmem:[%s247 + $0x88] sm:$0xff] %vm359, %v328
        %379 = vst.msk [vmem:[%s247 + $0x90] sm:$0xff] %vm359, %v330
        %380 = vst.msk [vmem:[%s247 + $0x98] sm:$0xff] %vm359, %v332
        %381 = vst.msk [vmem:[%s247 + $0xa0] sm:$0xff] %vm359, %v334
        %382 = vst.msk [vmem:[%s247 + $0xa8] sm:$0xf] %vm370, %v336
        %s383 = smul.u32 2, %s12
        %p384 = scmp.lt.s32.totalorder %s383, 7
        %s385 = scalar_select %p384, %s383, 7
        %s386 = smul.addr %s385, 11
        %s387 = smul.addr %s386, 8
        %s388 = scalar_lea.vmem %s1, %s387
        // Predicated region
        $region63: #{tpu_custom_call.1} parent=57 // pred_check
          %p389 = pneg %p56
        $region64: #{tpu_custom_call.1} parent=57 // pred_check_branch
          %391 = sbr.rel (%p389) target = $region66
        $region65: #{tpu_custom_call.1} parent=57 // pred_region
          %s392 = smul.u32 2, %s12
        $region66: #{tpu_custom_call.1} parent=57 // pred_fallthru
          _
      $region58: #{tpu_custom_call.1} parent=5 // pred_fallthru
        _
      %p393 = scmp.le.s32.totalorder 2, %s7
      // Predicated region
      $region67: #{tpu_custom_call.1} parent=5 // pred_check
        %p394 = pneg %p393
      $region68: #{tpu_custom_call.1} parent=5 // pred_check_branch
        %396 = sbr.rel (%p394) target = $region70
      $region69: #{tpu_custom_call.1} parent=5 // pred_region
        %s397 = ssub.s32 %s7, 2
        // Predicated region
        $region71: #{tpu_custom_call.1} parent=69 // pred_check
          %p398 = pneg %p62
        $region72: #{tpu_custom_call.1} parent=69 // pred_check_branch
          %400 = sbr.rel (%p398) target = $region74
        $region73: #{tpu_custom_call.1} parent=69 // pred_region
          %s401 = smul.u32 2, %s13
          %p402 = scmp.lt.s32.totalorder %s401, 7
          %s403 = scalar_select %p402, %s401, 7
          %s404 = smul.addr %s403, 11
          %s405 = smul.addr %s404, 8
          %s406 = scalar_lea.vmem %s1, %s405
        $region74: #{tpu_custom_call.1} parent=69 // pred_fallthru
          _
      $region70: #{tpu_custom_call.1} parent=5 // pred_fallthru
        _
    $region6: #{tpu_custom_call.1} parent=1 // loop_footer
      %s11 = sadd.s32 1, %s7
    $region7: #{tpu_custom_call.1} parent=1 // loop_footer_branch
      %6 = sbr.rel target = $region3
    $region8: #{tpu_custom_call.1} parent=1 // loop_exit
      _

</llo_original>
